<compile_context>
chip_gen: v7x
topology: tpu7x:2x2x1
jax: 0.10.0
libtpu: 0.0.40
codegen_flags: <defaults>
</compile_context>

<pallas_src>
import functools

import jax
import jax.numpy as jnp
from jax import lax
from jax.experimental import pallas as pl
from jax.experimental.pallas import tpu as pltpu


# ---------------------------------------------------------------------------
# Kernel 1: weighted N-D cross entropy on NCHW logits (segmentation head)
#   loss = sum_p w[t_p] * (-log_softmax(x_p)[t_p]) / sum_p w[t_p]
# Each grid step emits a per-block (num, den) partial into a lane-dense row.
# ---------------------------------------------------------------------------
def _seg_wce_kernel(w_ref, x_ref, t_ref, out_ref, *, num_classes, th, height):
    h = pl.program_id(1)

    x = x_ref[0].astype(jnp.float32)      # (C, th, W) logits, cast on load
    t = t_ref[0]                          # (th, W) int32 targets

    # log-sum-exp over the (tiny, static) class axis -- unrolled.
    m = x[0]
    for c in range(1, num_classes):
        m = jnp.maximum(m, x[c])
    s = jnp.exp(x[0] - m)
    for c in range(1, num_classes):
        s = s + jnp.exp(x[c] - m)
    lse = jnp.log(s) + m                  # (th, W)

    # gather logit and class-weight at the target class via C selects.
    x_t = jnp.zeros_like(m)
    w_t = jnp.zeros_like(m)
    for c in range(num_classes):
        sel = t == c
        x_t = jnp.where(sel, x[c], x_t)
        w_t = jnp.where(sel, w_ref[c], w_t)   # w_ref[c]: scalar read from SMEM

    nll = lse - x_t                       # (th, W)

    # mask rows past H for a partial last H-tile (also kills padded garbage)
    row = h * th + lax.broadcasted_iota(jnp.int32, nll.shape, 0)
    valid = row < height
    nll = jnp.where(valid, nll, 0.0)
    w_t = jnp.where(valid, w_t, 0.0)

    num = jnp.sum(w_t * nll)
    den = jnp.sum(w_t)

    lane = lax.broadcasted_iota(jnp.int32, out_ref.shape, 2)
    out_ref[...] = jnp.where(lane == 0, num, jnp.where(lane == 1, den, 0.0))


def seg_weighted_cross_entropy(logits_nchw, targets_nhw, class_weights,
                               *, target_block_bytes=2 * 1024 * 1024):
    """PyTorch-style weight-normalized CE over an NCHW logit map."""
    N, C, H, W = logits_nchw.shape
    weights = jnp.asarray(class_weights, jnp.float32).reshape(C)
    targets = targets_nhw.astype(jnp.int32)

    elem = jnp.dtype(logits_nchw.dtype).itemsize
    # ~2 MiB per logits block; sublane-aligned H-tiles; masked tail if needed.
    th = max(1, target_block_bytes // max(1, C * W * elem))
    th = max(8, (th // 8) * 8)
    th = min(th, H)
    n_h = pl.cdiv(H, th)

    cost = pl.CostEstimate(
        flops=int(8 * C * N * H * W),
        transcendentals=int((C + 1) * N * H * W),
        bytes_accessed=int(logits_nchw.size * elem + targets.size * 4
                           + N * n_h * 128 * 4),
    )

    partials = pl.pallas_call(
        functools.partial(_seg_wce_kernel, num_classes=C, th=th, height=H),
        out_shape=jax.ShapeDtypeStruct((N, n_h, 128), jnp.float32),
        grid_spec=pltpu.PrefetchScalarGridSpec(
            num_scalar_prefetch=1,            # class weights -> SMEM
            grid=(N, n_h),
            in_specs=[
                pl.BlockSpec((1, C, th, W), lambda n, h, w: (n, 0, h, 0)),
                pl.BlockSpec((1, th, W), lambda n, h, w: (n, h, 0)),
            ],
            out_specs=pl.BlockSpec((1, 1, 128), lambda n, h, w: (n, h, 0)),
        ),
        compiler_params=pltpu.CompilerParams(
            dimension_semantics=("parallel", "parallel")),
        cost_estimate=cost,
    )(weights, logits_nchw, targets)

    num = jnp.sum(partials[:, :, 0])
    den = jnp.sum(partials[:, :, 1])
    return num / den


# ---------------------------------------------------------------------------
# Kernel 2: SmoothL1 (Huber, beta=1.0) with mean reduction
# Per-block partial sums -> lane-dense (G, 128) output, mean finished in JAX.
# ---------------------------------------------------------------------------
def _smooth_l1_kernel(x_ref, t_ref, out_ref, *, tr, rows):
    i = pl.program_id(0)
    d = x_ref[...].astype(jnp.float32) - t_ref[...].astype(jnp.float32)
    ad = jnp.abs(d)
    per = jnp.where(ad < 1.0, 0.5 * d * d, ad - 0.5)

    # mask rows past the end for a partial last tile
    row = i * tr + lax.broadcasted_iota(jnp.int32, per.shape, 0)
    per = jnp.where(row < rows, per, 0.0)

    s = jnp.sum(per)
    lane = lax.broadcasted_iota(jnp.int32, out_ref.shape, 1)
    out_ref[...] = jnp.where(lane == 0, s, 0.0)


def smooth_l1_loss(pred, target, *, target_block_bytes=2 * 1024 * 1024):
    assert pred.shape == target.shape
    total = pred.size
    # Only free, contiguous reshapes (never a transpose or a pad):
    if total % 128 == 0:
        cols = 128                          # fully lane-dense slab
    else:
        cols = pred.shape[-1]               # keep native minor dim
    rows = total // cols
    x2 = pred.reshape(rows, cols)
    t2 = target.reshape(rows, cols)

    elem = jnp.dtype(pred.dtype).itemsize
    tr = max(1, target_block_bytes // max(1, cols * elem))
    tr = max(8, (tr // 8) * 8)
    tr = min(tr, rows)
    g = pl.cdiv(rows, tr)

    cost = pl.CostEstimate(
        flops=int(6 * total),
        transcendentals=0,
        bytes_accessed=int(2 * total * elem + g * 128 * 4),
    )

    partials = pl.pallas_call(
        functools.partial(_smooth_l1_kernel, tr=tr, rows=rows),
        out_shape=jax.ShapeDtypeStruct((g, 128), jnp.float32),
        grid_spec=pltpu.PrefetchScalarGridSpec(
            num_scalar_prefetch=0,
            grid=(g,),
            in_specs=[
                pl.BlockSpec((tr, cols), lambda i: (i, 0)),
                pl.BlockSpec((tr, cols), lambda i: (i, 0)),
            ],
            out_specs=pl.BlockSpec((1, 128), lambda i: (i, 0)),
        ),
        compiler_params=pltpu.CompilerParams(dimension_semantics=("parallel",)),
        cost_estimate=cost,
    )(x2, t2)
    return jnp.sum(partials) / total


# ---------------------------------------------------------------------------
# Classification CE: tiny (batch x few classes) -> plain JAX per perf review
# (a pallas_call launch would dwarf the few hundred FLOPs of this head).
# ---------------------------------------------------------------------------
def classification_cross_entropy(logits, targets, class_weights):
    logits = logits.astype(jnp.float32)
    t = targets.astype(jnp.int32)
    logp = jax.nn.log_softmax(logits, axis=-1)
    nll = -jnp.take_along_axis(logp, t[:, None], axis=-1)[:, 0]
    wt = jnp.asarray(class_weights, jnp.float32)[t]
    return jnp.sum(wt * nll) / jnp.sum(wt)


# ---------------------------------------------------------------------------
# MultiTaskLoss forward (default configuration of the PyTorch module:
#   fix_multitask_weight=True, normalize_mode=True,
#   use_geometrical_multitask=False, use_uncertainity_multitask=False)
# ---------------------------------------------------------------------------
class MultiTaskLossPallas:
    def __init__(self, tissue_weights, class_weights,
                 multitask_weight=(1.0, 1.0, 1.0),
                 normalize_rate=100, learning_rate=0.5, epsilon=1e-5):
        self.tissue_weights = jnp.asarray(tissue_weights, jnp.float32)
        self.class_weights = jnp.asarray(class_weights, jnp.float32)
        self.multitask_weight = multitask_weight
        self.normalize_rate = normalize_rate
        self.learning_rate = learning_rate
        self.epsilon = epsilon
        # deterministic parameter / buffer init (torch.ones(1))
        self.eta_seg = jnp.ones((1,), jnp.float32)     # unused in default path
        self.eta_class = jnp.ones((1,), jnp.float32)   # unused in default path
        self.eta_reg = jnp.ones((1,), jnp.float32)     # unused in default path
        self.running_seg_loss = jnp.ones((1,), jnp.float32)
        self.running_class_loss = jnp.ones((1,), jnp.float32)
        self.running_reg_loss = jnp.ones((1,), jnp.float32)
        self.seg_loss_updated = jnp.ones((1,), jnp.float32)
        self.class_loss_updated = jnp.ones((1,), jnp.float32)
        self.reg_loss_updated = jnp.ones((1,), jnp.float32)

    def __call__(self, x, tgs, idx):
        x_s, x_c, x_r = x
        tgs_s, tgs_c, tgs_r = tgs

        # segmentation CE directly on NCHW (no transpose / extra HBM pass)
        seg_loss = seg_weighted_cross_entropy(x_s, tgs_s, self.tissue_weights)

        # classification CE: (N, num_classes) -- plain JAX (tiny)
        class_loss = classification_cross_entropy(x_c, tgs_c, self.class_weights)

        # regression SmoothL1 (beta=1, mean) -- Pallas kernel
        reg_loss = smooth_l1_loss(x_r, tgs_r)

        # --- scalar multitask combination (plain JAX glue) ---
        mw = self.multitask_weight
        w1 = mw[0] / (mw[0] + mw[1] + mw[2])
        w2 = mw[1] / (mw[0] + mw[1] + mw[2])
        w3 = 1.0 - w1 - w2

        lr = self.learning_rate
        self.running_seg_loss = (1 - lr) * self.running_seg_loss + lr * seg_loss
        self.running_class_loss = (1 - lr) * self.running_class_loss + lr * class_loss
        self.running_reg_loss = (1 - lr) * self.running_reg_loss + lr * reg_loss
        # NOTE: idx must be a static Python int (same as the PyTorch module's
        # non-traced buffer update); do not jit this method with a traced idx.
        if idx > 0 and idx % self.normalize_rate == 0:
            self.seg_loss_updated = self.running_seg_loss
            self.class_loss_updated = self.running_class_loss
            self.reg_loss_updated = self.running_reg_loss

        seg_n = seg_loss / (self.seg_loss_updated + self.epsilon)
        class_n = class_loss / (self.class_loss_updated + self.epsilon)
        reg_n = reg_loss / (self.reg_loss_updated + self.epsilon)
        loss_combined = w1 * seg_n + w2 * class_n + w3 * reg_n  # shape (1,)
        return loss_combined, (seg_loss, class_loss, reg_loss)


# ---------------------------------------------------------------------------
# pure-JAX references (correctness checks for the kernels)
# ---------------------------------------------------------------------------
def _ref_wce(logits_2d, targets_1d, weights_1d):
    logp = jax.nn.log_softmax(logits_2d.astype(jnp.float32), axis=-1)
    nll = -jnp.take_along_axis(logp, targets_1d[:, None].astype(jnp.int32), axis=-1)[:, 0]
    wt = weights_1d[targets_1d]
    return jnp.sum(wt * nll) / jnp.sum(wt)


def _ref_smooth_l1(pred, target):
    d = pred.astype(jnp.float32) - target.astype(jnp.float32)
    ad = jnp.abs(d)
    return jnp.mean(jnp.where(ad < 1.0, 0.5 * d * d, ad - 0.5))


if __name__ == "__main__":
    key = jax.random.PRNGKey(0)
    k1, k2, k3, k4, k5, k6 = jax.random.split(key, 6)

    N, C_seg, H, W = 2, 4, 16, 16
    C_cls = 3
    # segmentation head
    x_s = jax.random.normal(k1, (N, C_seg, H, W), jnp.float32)
    tgs_s = jax.random.randint(k2, (N, H, W), 0, C_seg, jnp.int32)
    # classification head
    x_c = jax.random.normal(k3, (N, C_cls), jnp.float32)
    tgs_c = jax.random.randint(k4, (N,), 0, C_cls, jnp.int32)
    # regression head
    x_r = jax.random.normal(k5, (N, C_seg, H, W), jnp.float32)
    tgs_r = jax.random.normal(k6, (N, C_seg, H, W), jnp.float32)

    tissue_weights = [1.0, 2.0, 0.5, 1.5]
    class_weights = [1.0, 0.5, 2.0]

    mtl = MultiTaskLossPallas(tissue_weights, class_weights)
    loss_combined, (seg_l, class_l, reg_l) = mtl(
        (x_s, x_c, x_r), (tgs_s, tgs_c, tgs_r), idx=0)
    loss_combined = jax.block_until_ready(loss_combined)

    # reference check (reference uses the transpose path; the kernel does not)
    seg_logits_ref = jnp.transpose(x_s, (0, 2, 3, 1)).reshape(N * H * W, C_seg)
    ref_seg = _ref_wce(seg_logits_ref, tgs_s.reshape(-1),
                       jnp.asarray(tissue_weights, jnp.float32))
    ref_cls = _ref_wce(x_c, tgs_c, jnp.asarray(class_weights, jnp.float32))
    ref_reg = _ref_smooth_l1(x_r, tgs_r)
    ref_combined = (1.0 / 3.0) * (ref_seg / (1.0 + 1e-5)
                                  + ref_cls / (1.0 + 1e-5)
                                  + ref_reg / (1.0 + 1e-5))

    assert jnp.allclose(seg_l, ref_seg, rtol=1e-4, atol=1e-5), (seg_l, ref_seg)
    assert jnp.allclose(class_l, ref_cls, rtol=1e-4, atol=1e-5), (class_l, ref_cls)
    assert jnp.allclose(reg_l, ref_reg, rtol=1e-4, atol=1e-5), (reg_l, ref_reg)
    assert jnp.allclose(loss_combined, ref_combined, rtol=1e-4, atol=1e-5), (
        loss_combined, ref_combined)

    print("KERNEL_OK")
</pallas_src>

<mosaic_0001>
module attributes {stable_mosaic.version = 11 : i64} {
  func.func @_seg_wce_kernel(%arg0: i32, %arg1: i32, %arg2: memref<4xf32, #tpu.memory_space<smem>>, %arg3: memref<1x4x16x16xf32, #tpu.memory_space<vmem>>, %arg4: memref<1x16x16xi32, #tpu.memory_space<vmem>>, %arg5: memref<1x1x128xf32, #tpu.memory_space<vmem>>) attributes {dimension_semantics = [#tpu.dimension_semantics<parallel>, #tpu.dimension_semantics<parallel>], iteration_bounds = array<i64: 2, 1>, scalar_prefetch = 1 : i64, scratch_operands = 0 : i64, tpu.core_type = #tpu.core_type<tc>, window_params = [{transform_indices = @transform_0, window_bounds = array<i64: 1, 4, 16, 16>}, {transform_indices = @transform_1, window_bounds = array<i64: 1, 16, 16>}, {transform_indices = @transform_2, window_bounds = array<i64: 1, 1, 128>}]} {
    %c0 = arith.constant 0 : index
    %c0_0 = arith.constant 0 : index
    %c0_1 = arith.constant 0 : index
    %c0_2 = arith.constant 0 : index
    %0 = vector.load %arg3[%c0, %c0_0, %c0_1, %c0_2] : memref<1x4x16x16xf32, #tpu.memory_space<vmem>>, vector<1x4x16x16xf32>
    %1 = vector.shape_cast %0 : vector<1x4x16x16xf32> to vector<4x16x16xf32>
    %c0_3 = arith.constant 0 : index
    %c0_4 = arith.constant 0 : index
    %c0_5 = arith.constant 0 : index
    %2 = vector.load %arg4[%c0_3, %c0_4, %c0_5] : memref<1x16x16xi32, #tpu.memory_space<vmem>>, vector<1x16x16xi32>
    %3 = vector.shape_cast %2 : vector<1x16x16xi32> to vector<16x16xi32>
    %4 = vector.extract_strided_slice %1 {offsets = [0, 0, 0], sizes = [1, 16, 16], strides = [1, 1, 1]} : vector<4x16x16xf32> to vector<1x16x16xf32>
    %5 = vector.shape_cast %4 : vector<1x16x16xf32> to vector<16x16xf32>
    %6 = vector.extract_strided_slice %1 {offsets = [1, 0, 0], sizes = [1, 16, 16], strides = [1, 1, 1]} : vector<4x16x16xf32> to vector<1x16x16xf32>
    %7 = vector.shape_cast %6 : vector<1x16x16xf32> to vector<16x16xf32>
    %8 = arith.maximumf %5, %7 : vector<16x16xf32>
    %9 = vector.extract_strided_slice %1 {offsets = [2, 0, 0], sizes = [1, 16, 16], strides = [1, 1, 1]} : vector<4x16x16xf32> to vector<1x16x16xf32>
    %10 = vector.shape_cast %9 : vector<1x16x16xf32> to vector<16x16xf32>
    %11 = arith.maximumf %8, %10 : vector<16x16xf32>
    %12 = vector.extract_strided_slice %1 {offsets = [3, 0, 0], sizes = [1, 16, 16], strides = [1, 1, 1]} : vector<4x16x16xf32> to vector<1x16x16xf32>
    %13 = vector.shape_cast %12 : vector<1x16x16xf32> to vector<16x16xf32>
    %14 = arith.maximumf %11, %13 : vector<16x16xf32>
    %15 = vector.extract_strided_slice %1 {offsets = [0, 0, 0], sizes = [1, 16, 16], strides = [1, 1, 1]} : vector<4x16x16xf32> to vector<1x16x16xf32>
    %16 = vector.shape_cast %15 : vector<1x16x16xf32> to vector<16x16xf32>
    %17 = arith.subf %16, %14 : vector<16x16xf32>
    %18 = math.exp %17 : vector<16x16xf32>
    %19 = vector.extract_strided_slice %1 {offsets = [1, 0, 0], sizes = [1, 16, 16], strides = [1, 1, 1]} : vector<4x16x16xf32> to vector<1x16x16xf32>
    %20 = vector.shape_cast %19 : vector<1x16x16xf32> to vector<16x16xf32>
    %21 = arith.subf %20, %14 : vector<16x16xf32>
    %22 = math.exp %21 : vector<16x16xf32>
    %23 = arith.addf %18, %22 : vector<16x16xf32>
    %24 = vector.extract_strided_slice %1 {offsets = [2, 0, 0], sizes = [1, 16, 16], strides = [1, 1, 1]} : vector<4x16x16xf32> to vector<1x16x16xf32>
    %25 = vector.shape_cast %24 : vector<1x16x16xf32> to vector<16x16xf32>
    %26 = arith.subf %25, %14 : vector<16x16xf32>
    %27 = math.exp %26 : vector<16x16xf32>
    %28 = arith.addf %23, %27 : vector<16x16xf32>
    %29 = vector.extract_strided_slice %1 {offsets = [3, 0, 0], sizes = [1, 16, 16], strides = [1, 1, 1]} : vector<4x16x16xf32> to vector<1x16x16xf32>
    %30 = vector.shape_cast %29 : vector<1x16x16xf32> to vector<16x16xf32>
    %31 = arith.subf %30, %14 : vector<16x16xf32>
    %32 = math.exp %31 : vector<16x16xf32>
    %33 = arith.addf %28, %32 : vector<16x16xf32>
    %34 = math.log %33 : vector<16x16xf32>
    %35 = arith.addf %34, %14 : vector<16x16xf32>
    %cst = arith.constant 0.000000e+00 : f32
    %36 = vector.broadcast %cst : f32 to vector<16x16xf32>
    %cst_6 = arith.constant 0.000000e+00 : f32
    %37 = vector.broadcast %cst_6 : f32 to vector<16x16xf32>
    %c0_i32 = arith.constant 0 : i32
    %38 = vector.broadcast %c0_i32 : i32 to vector<16x16xi32>
    %39 = arith.cmpi eq, %3, %38 : vector<16x16xi32>
    %40 = vector.extract_strided_slice %1 {offsets = [0, 0, 0], sizes = [1, 16, 16], strides = [1, 1, 1]} : vector<4x16x16xf32> to vector<1x16x16xf32>
    %41 = vector.shape_cast %40 : vector<1x16x16xf32> to vector<16x16xf32>
    %42 = arith.select %39, %41, %36 : vector<16x16xi1>, vector<16x16xf32>
    %c0_7 = arith.constant 0 : index
    %43 = memref.load %arg2[%c0_7] : memref<4xf32, #tpu.memory_space<smem>>
    %44 = vector.broadcast %43 : f32 to vector<16x16xf32>
    %45 = arith.select %39, %44, %37 : vector<16x16xi1>, vector<16x16xf32>
    %c1_i32 = arith.constant 1 : i32
    %46 = vector.broadcast %c1_i32 : i32 to vector<16x16xi32>
    %47 = arith.cmpi eq, %3, %46 : vector<16x16xi32>
    %48 = vector.extract_strided_slice %1 {offsets = [1, 0, 0], sizes = [1, 16, 16], strides = [1, 1, 1]} : vector<4x16x16xf32> to vector<1x16x16xf32>
    %49 = vector.shape_cast %48 : vector<1x16x16xf32> to vector<16x16xf32>
    %50 = arith.select %47, %49, %42 : vector<16x16xi1>, vector<16x16xf32>
    %c1 = arith.constant 1 : index
    %51 = memref.load %arg2[%c1] : memref<4xf32, #tpu.memory_space<smem>>
    %52 = vector.broadcast %51 : f32 to vector<16x16xf32>
    %53 = arith.select %47, %52, %45 : vector<16x16xi1>, vector<16x16xf32>
    %c2_i32 = arith.constant 2 : i32
    %54 = vector.broadcast %c2_i32 : i32 to vector<16x16xi32>
    %55 = arith.cmpi eq, %3, %54 : vector<16x16xi32>
    %56 = vector.extract_strided_slice %1 {offsets = [2, 0, 0], sizes = [1, 16, 16], strides = [1, 1, 1]} : vector<4x16x16xf32> to vector<1x16x16xf32>
    %57 = vector.shape_cast %56 : vector<1x16x16xf32> to vector<16x16xf32>
    %58 = arith.select %55, %57, %50 : vector<16x16xi1>, vector<16x16xf32>
    %c2 = arith.constant 2 : index
    %59 = memref.load %arg2[%c2] : memref<4xf32, #tpu.memory_space<smem>>
    %60 = vector.broadcast %59 : f32 to vector<16x16xf32>
    %61 = arith.select %55, %60, %53 : vector<16x16xi1>, vector<16x16xf32>
    %c3_i32 = arith.constant 3 : i32
    %62 = vector.broadcast %c3_i32 : i32 to vector<16x16xi32>
    %63 = arith.cmpi eq, %3, %62 : vector<16x16xi32>
    %64 = vector.extract_strided_slice %1 {offsets = [3, 0, 0], sizes = [1, 16, 16], strides = [1, 1, 1]} : vector<4x16x16xf32> to vector<1x16x16xf32>
    %65 = vector.shape_cast %64 : vector<1x16x16xf32> to vector<16x16xf32>
    %66 = arith.select %63, %65, %58 : vector<16x16xi1>, vector<16x16xf32>
    %c3 = arith.constant 3 : index
    %67 = memref.load %arg2[%c3] : memref<4xf32, #tpu.memory_space<smem>>
    %68 = vector.broadcast %67 : f32 to vector<16x16xf32>
    %69 = arith.select %63, %68, %61 : vector<16x16xi1>, vector<16x16xf32>
    %70 = arith.subf %35, %66 : vector<16x16xf32>
    %c16_i32 = arith.constant 16 : i32
    %71 = arith.muli %arg1, %c16_i32 : i32
    %72 = tpu.iota {dimensions = array<i32: 0>} : vector<16x16xi32>
    %73 = vector.broadcast %71 : i32 to vector<16x16xi32>
    %74 = arith.addi %73, %72 : vector<16x16xi32>
    %c16_i32_8 = arith.constant 16 : i32
    %75 = vector.broadcast %c16_i32_8 : i32 to vector<16x16xi32>
    %76 = arith.cmpi slt, %74, %75 : vector<16x16xi32>
    %cst_9 = arith.constant 0.000000e+00 : f32
    %77 = vector.broadcast %cst_9 : f32 to vector<16x16xf32>
    %78 = arith.select %76, %70, %77 : vector<16x16xi1>, vector<16x16xf32>
    %cst_10 = arith.constant 0.000000e+00 : f32
    %79 = vector.broadcast %cst_10 : f32 to vector<16x16xf32>
    %80 = arith.select %76, %69, %79 : vector<16x16xi1>, vector<16x16xf32>
    %81 = arith.mulf %80, %78 : vector<16x16xf32>
    %82 = vector.shape_cast %81 : vector<16x16xf32> to vector<1x16x16xf32>
    %cst_11 = arith.constant dense<0.000000e+00> : vector<1xf32>
    %83 = vector.multi_reduction <add>, %82, %cst_11 [1, 2] : vector<1x16x16xf32> to vector<1xf32>
    %84 = vector.shape_cast %83 : vector<1xf32> to vector<1x1x1xf32>
    %85 = vector.extract %84[0, 0, 0] : f32 from vector<1x1x1xf32>
    %86 = vector.shape_cast %80 : vector<16x16xf32> to vector<1x16x16xf32>
    %cst_12 = arith.constant dense<0.000000e+00> : vector<1xf32>
    %87 = vector.multi_reduction <add>, %86, %cst_12 [1, 2] : vector<1x16x16xf32> to vector<1xf32>
    %88 = vector.shape_cast %87 : vector<1xf32> to vector<1x1x1xf32>
    %89 = vector.extract %88[0, 0, 0] : f32 from vector<1x1x1xf32>
    %90 = tpu.iota {dimensions = array<i32: 2>} : vector<1x1x128xi32>
    %c0_i32_13 = arith.constant 0 : i32
    %91 = vector.broadcast %c0_i32_13 : i32 to vector<1x1x128xi32>
    %92 = arith.cmpi eq, %90, %91 : vector<1x1x128xi32>
    %c1_i32_14 = arith.constant 1 : i32
    %93 = vector.broadcast %c1_i32_14 : i32 to vector<1x1x128xi32>
    %94 = arith.cmpi eq, %90, %93 : vector<1x1x128xi32>
    %cst_15 = arith.constant 0.000000e+00 : f32
    %95 = vector.broadcast %89 : f32 to vector<1x1x128xf32>
    %96 = vector.broadcast %cst_15 : f32 to vector<1x1x128xf32>
    %97 = arith.select %94, %95, %96 : vector<1x1x128xi1>, vector<1x1x128xf32>
    %98 = vector.broadcast %85 : f32 to vector<1x1x128xf32>
    %99 = arith.select %92, %98, %97 : vector<1x1x128xi1>, vector<1x1x128xf32>
    %c0_16 = arith.constant 0 : index
    %c0_17 = arith.constant 0 : index
    %c0_18 = arith.constant 0 : index
    %100 = vector.load %arg5[%c0_16, %c0_17, %c0_18] : memref<1x1x128xf32, #tpu.memory_space<vmem>>, vector<1x1x128xf32>
    tpu.vector_store %arg5[%c0_16, %c0_17, %c0_18], %99 {strides = array<i32>} : memref<1x1x128xf32, #tpu.memory_space<vmem>>, vector<1x1x128xf32>,
    return
  }
  func.func @transform_0(%arg0: i32, %arg1: i32, %arg2: memref<4xf32, #tpu.memory_space<smem>>) -> (i32, i32, i32, i32) {
    %c0_i32 = arith.constant 0 : i32
    %c0_i32_0 = arith.constant 0 : i32
    %c0_i32_1 = arith.constant 0 : i32
    return %arg0, %c0_i32, %arg1, %c0_i32_0 : i32, i32, i32, i32
  }
  func.func @transform_1(%arg0: i32, %arg1: i32, %arg2: memref<4xf32, #tpu.memory_space<smem>>) -> (i32, i32, i32) {
    %c0_i32 = arith.constant 0 : i32
    %c0_i32_0 = arith.constant 0 : i32
    return %arg0, %arg1, %c0_i32 : i32, i32, i32
  }
  func.func @transform_2(%arg0: i32, %arg1: i32, %arg2: memref<4xf32, #tpu.memory_space<smem>>) -> (i32, i32, i32) {
    %c0_i32 = arith.constant 0 : i32
    %c0_i32_0 = arith.constant 0 : i32
    return %arg0, %arg1, %c0_i32 : i32, i32, i32
  }
}

</mosaic_0001>

<llo_original>
// kernel: tpu_custom_call.1
$region0: #{tpu_custom_call.1}
  #allocation0 [shape = 'u32[]', space=smem, size = 0x4, offset = 0x4, fixed_abs, tag = 'smem constant byte address 0x4 - core index']
  #allocation1 [shape = 'u32[144,128]{1,0:T(1,128)}', space=vmem, size = 0x12000, scoped, tag = 'internal scratch']
  #allocation2 [shape = 's32[1]{0}', space=sflag, size = 0x4, scoped, tag = 'scoped memory for tpu_custom_call.1']
  #allocation3 [shape = 'u8[512]{0}', space=smem, size = 0x200, scoped, tag = 'prefetched SMEM operand 0']
  %s0 = inlined_call_operand.hbm [shape: f32[4], index: 0, kind: input, shape index: {}]
  %s1 = inlined_call_operand.hbm [shape: f32[2,4,16,16], index: 1, kind: input, shape index: {}]
  %s2 = inlined_call_operand.hbm [shape: s32[2,16,16], index: 2, kind: input, shape index: {}]
  %s3 = inlined_call_operand.hbm [shape: f32[2,1,128], index: 3, kind: output, shape index: {}]
  %s4 = sld [smem:[#allocation0]]
  $region49: #{tpu_custom_call.1} parent=0
    _
  %s6 = ssub.s32 1, %s4
  %s7 = scalar_select 0, %s6, %s4
  %9 = dma.hbm_to_smem %s0, 16, [#allocation3], [#allocation2]
  %10 = dma.done [#allocation2], 16
  %11 = sfence
  $region1: #{tpu_custom_call.1} parent=0
    #allocation4 [shape = 'u8[65536]{0}', space=vmem, size = 0x10000, scoped, tag = 'input window, operand 1']
    #allocation5 [shape = 's32[2]{0}', space=sflag, size = 0x8, scoped, tag = 'scoped memory for tpu_custom_call.1']
    #allocation6 [shape = 's32[2]{0}', space=sflag, size = 0x8, scoped, tag = 'scoped memory for tpu_custom_call.1']
    #allocation7 [shape = 'u8[16384]{0}', space=vmem, size = 0x4000, scoped, tag = 'input window, operand 2']
    #allocation8 [shape = 's32[2]{0}', space=sflag, size = 0x8, scoped, tag = 'scoped memory for tpu_custom_call.1']
    #allocation9 [shape = 'u8[1024]{0}', space=vmem, size = 0x400, scoped, tag = 'output window, operand 0']
    %12 = vsyncpa [#allocation5], 0
    %s13 = scalar_lea.sflag [#allocation5], 1
    %14 = vsyncpa %s13, 0
    %15 = vsyncpa [#allocation8], 0
    %s16 = scalar_lea.sflag [#allocation8], 1
    %17 = vsyncpa %s16, 0
    %18 = vsyncpa [#allocation6], 0
    %s19 = scalar_lea.sflag [#allocation6], 1
    %20 = vsyncpa %s19, 0
    loop: start=0, step=1, limit=4
    $region2: #{tpu_custom_call.1} parent=1 // loop_pre_header
      _
    $region3: #{tpu_custom_call.1} parent=1 // loop_header
      %s22 = sphi 0, %s26
      %p23 = scmp.ge.s32.totalorder %s22, 4
      %s29 = sphi 0, %s41
      %s30 = sphi 0, %s37
      %s31 = sphi 0, %s29
      %s32 = sphi 0, %s30
      %s33 = sphi 0, %s31
      %s34 = sphi 0, %s32
      %s46 = sphi 0, %s48
      %s49 = sphi 0, %s46
      %s50 = sphi 0, %s49
      %s66 = sphi 0, %s50
      %s74 = sphi 0, %s76
      %s77 = sphi 0, %s74
      %s78 = sphi 0, %s77
      %s94 = sphi 0, %s78
      %s102 = sphi 0, %s104
      %s105 = sphi 0, %s102
      %s106 = sphi 0, %s105
      %s122 = sphi 0, %s106
    $region4: #{tpu_custom_call.1} parent=1 // loop_header_branch
      %25 = sbr.rel (%p23) target = $region8
    $region5: #{tpu_custom_call.1} parent=1 // loop_body
      %s27 = ssub.s32 %s22, 1
      %s28 = ssub.s32 %s22, 2
      %s35 = sadd.s32 1, %s30
      %p36 = scmp.ge.s32.totalorder %s35, 1
      %s37 = scalar_select %p36, 0, %s35
      %s38 = sadd.s32 1, %s29
      %s39 = scalar_select %p36, %s38, %s29
      %p40 = scmp.ge.s32.totalorder %s39, 2
      %s41 = scalar_select %p40, 0, %s39
      %s42 = ssub.s32 %s29, %s41
      %s43 = ssub.s32 %s30, %s37
      %s44 = sor.u32 %s42, %s43
      %p45 = scmp.eq.s32.totalorder %s44, 0
      %s47 = sadd.s32 %s46, 1
      %s48 = scalar_select %p45, %s46, %s47
      %p51 = pneg %p45
      %p52 = scmp.eq.s32.totalorder %s22, 1
      %p53 = por %p51, %p52
      %p54 = scmp.ne.s32.totalorder %s46, %s49
      %p55 = scmp.eq.s32.totalorder %s22, 0
      %p56 = por %p54, %p55
      %p57 = scmp.ne.s32.totalorder %s46, %s49
      %p58 = scmp.eq.s32.totalorder %s27, 1
      %p59 = por %p57, %p58
      %p60 = scmp.ne.s32.totalorder %s49, %s50
      %p61 = scmp.eq.s32.totalorder %s27, 0
      %p62 = por %p60, %p61
      %p63 = scmp.ne.s32.totalorder %s49, %s50
      %p64 = scmp.eq.s32.totalorder %s28, 1
      %p65 = por %p63, %p64
      %p67 = scmp.ne.s32.totalorder %s50, %s66
      %p68 = scmp.eq.s32.totalorder %s28, 0
      %p69 = por %p67, %p68
      %s70 = ssub.s32 %s29, %s41
      %s71 = ssub.s32 %s30, %s37
      %s72 = sor.u32 %s70, %s71
      %p73 = scmp.eq.s32.totalorder %s72, 0
      %s75 = sadd.s32 %s74, 1
      %s76 = scalar_select %p73, %s74, %s75
      %p79 = pneg %p73
      %p80 = scmp.eq.s32.totalorder %s22, 1
      %p81 = por %p79, %p80
      %p82 = scmp.ne.s32.totalorder %s74, %s77
      %p83 = scmp.eq.s32.totalorder %s22, 0
      %p84 = por %p82, %p83
      %p85 = scmp.ne.s32.totalorder %s74, %s77
      %p86 = scmp.eq.s32.totalorder %s27, 1
      %p87 = por %p85, %p86
      %p88 = scmp.ne.s32.totalorder %s77, %s78
      %p89 = scmp.eq.s32.totalorder %s27, 0
      %p90 = por %p88, %p89
      %p91 = scmp.ne.s32.totalorder %s77, %s78
      %p92 = scmp.eq.s32.totalorder %s28, 1
      %p93 = por %p91, %p92
      %p95 = scmp.ne.s32.totalorder %s78, %s94
      %p96 = scmp.eq.s32.totalorder %s28, 0
      %p97 = por %p95, %p96
      %s98 = ssub.s32 %s29, %s41
      %s99 = ssub.s32 %s30, %s37
      %s100 = sor.u32 %s98, %s99
      %p101 = scmp.eq.s32.totalorder %s100, 0
      %s103 = sadd.s32 %s102, 1
      %s104 = scalar_select %p101, %s102, %s103
      %p107 = pneg %p101
      %p108 = scmp.eq.s32.totalorder %s22, 1
      %p109 = por %p107, %p108
      %p110 = scmp.ne.s32.totalorder %s102, %s105
      %p111 = scmp.eq.s32.totalorder %s22, 0
      %p112 = por %p110, %p111
      %p113 = scmp.ne.s32.totalorder %s102, %s105
      %p114 = scmp.eq.s32.totalorder %s27, 1
      %p115 = por %p113, %p114
      %p116 = scmp.ne.s32.totalorder %s105, %s106
      %p117 = scmp.eq.s32.totalorder %s27, 0
      %p118 = por %p116, %p117
      %p119 = scmp.ne.s32.totalorder %s105, %s106
      %p120 = scmp.eq.s32.totalorder %s28, 1
      %p121 = por %p119, %p120
      %p123 = scmp.ne.s32.totalorder %s106, %s122
      %p124 = scmp.eq.s32.totalorder %s28, 0
      %p125 = por %p123, %p124
      %p126 = scmp.le.s32.totalorder 1, %s22
      %p127 = scmp.lt.s32.totalorder %s22, 3
      %p128 = pnand %p126, %p127
      %p129 = pneg %p128
      // Predicated region
      $region9: #{tpu_custom_call.1} parent=5 // pred_check
        _
      $region10: #{tpu_custom_call.1} parent=5 // pred_check_branch
        %131 = sbr.rel (%p128) target = $region12
      $region11: #{tpu_custom_call.1} parent=5 // pred_region
        %s132 = ssub.s32 %s22, 1
      $region12: #{tpu_custom_call.1} parent=5 // pred_fallthru
        _
      %p133 = scmp.lt.s32.totalorder %s22, 2
      // Predicated region
      $region13: #{tpu_custom_call.1} parent=5 // pred_check
        %p134 = pneg %p133
      $region14: #{tpu_custom_call.1} parent=5 // pred_check_branch
        %136 = sbr.rel (%p134) target = $region16
      $region15: #{tpu_custom_call.1} parent=5 // pred_region
        // Predicated region
        $region17: #{tpu_custom_call.1} parent=15 // pred_check
          %p137 = pneg %p56
        $region18: #{tpu_custom_call.1} parent=15 // pred_check_branch
          %139 = sbr.rel (%p137) target = $region20
        $region19: #{tpu_custom_call.1} parent=15 // pred_region
          %s140 = sand.u32 %s46, 1
          %s141 = scalar_lea.sflag [#allocation5], %s140
          %s142 = sand.u32 %s46, 1
          %s143 = smul.addr %s142, 64
          %s144 = scalar_lea.vmem [#allocation4], %s143
          %s145 = smul.u32 2, %s30
          %s147 = ssub.s32 1024, 1024
          %148 = vsyncadd %s141, %s147
          %s149 = smul.addr %s29, 8
          %s150 = sadd.s32 %s145, %s149
          %s151 = smul.addr %s150, 128
          %s152 = scalar_lea.hbm %s1, %s151
          %s153 = sshll.u32 %s144, 4
          %s154 = int_to_ptr.vmem [resolvable:$true] %s153
          %159 = dma.hbm_to_vmem [thread:$0]  %s152, 1024, %s154, %s141, 128, 128, 8
        $region20: #{tpu_custom_call.1} parent=15 // pred_fallthru
          _
        // Predicated region
        $region21: #{tpu_custom_call.1} parent=15 // pred_check
          %p160 = pneg %p84
        $region22: #{tpu_custom_call.1} parent=15 // pred_check_branch
          %162 = sbr.rel (%p160) target = $region24
        $region23: #{tpu_custom_call.1} parent=15 // pred_region
          %s163 = sand.u32 %s74, 1
          %s164 = scalar_lea.sflag [#allocation8], %s163
          %s165 = sand.u32 %s74, 1
          %s166 = smul.addr %s165, 16
          %s167 = scalar_lea.vmem [#allocation7], %s166
          %s168 = smul.u32 2, %s30
          %s170 = ssub.s32 256, 256
          %171 = vsyncadd %s164, %s170
          %s172 = smul.addr %s29, 2
          %s173 = sadd.s32 %s168, %s172
          %s174 = smul.addr %s173, 128
          %s175 = scalar_lea.hbm %s2, %s174
          %s176 = sshll.u32 %s167, 4
          %s177 = int_to_ptr.vmem [resolvable:$true] %s176
          %182 = dma.hbm_to_vmem [thread:$0]  %s175, 256, %s177, %s164, 128, 128, 8
        $region24: #{tpu_custom_call.1} parent=15 // pred_fallthru
          _
      $region16: #{tpu_custom_call.1} parent=5 // pred_fallthru
        _
      %p183 = scmp.le.s32.totalorder 1, %s22
      %p184 = scmp.lt.s32.totalorder %s22, 3
      %p185 = pnand %p183, %p184
      %p186 = pneg %p185
      // Predicated region
      $region25: #{tpu_custom_call.1} parent=5 // pred_check
        _
      $region26: #{tpu_custom_call.1} parent=5 // pred_check_branch
        %188 = sbr.rel (%p185) target = $region28
      $region27: #{tpu_custom_call.1} parent=5 // pred_region
        %s189 = ssub.s32 %s22, 1
        %s190 = sand.u32 %s49, 1
        %s191 = scalar_lea.sflag [#allocation5], %s190
        %s192 = sand.u32 %s49, 1
        %s193 = smul.addr %s192, 64
        %s194 = scalar_lea.vmem [#allocation4], %s193
        // Predicated region
        $region29: #{tpu_custom_call.1} parent=27 // pred_check
          %p195 = pneg %p62
        $region30: #{tpu_custom_call.1} parent=27 // pred_check_branch
          %197 = sbr.rel (%p195) target = $region32
        $region31: #{tpu_custom_call.1} parent=27 // pred_region
          %198 = dma.done %s191, 1024
        $region32: #{tpu_custom_call.1} parent=27 // pred_fallthru
          _
        %s199 = sand.u32 %s77, 1
        %s200 = scalar_lea.sflag [#allocation8], %s199
        %s201 = sand.u32 %s77, 1
        %s202 = smul.addr %s201, 16
        %s203 = scalar_lea.vmem [#allocation7], %s202
        // Predicated region
        $region33: #{tpu_custom_call.1} parent=27 // pred_check
          %p204 = pneg %p90
        $region34: #{tpu_custom_call.1} parent=27 // pred_check_branch
          %206 = sbr.rel (%p204) target = $region36
        $region35: #{tpu_custom_call.1} parent=27 // pred_region
          %207 = dma.done %s200, 256
        $region36: #{tpu_custom_call.1} parent=27 // pred_fallthru
          _
        %s208 = sand.u32 %s49, 1
        %s209 = scalar_lea.sflag [#allocation5], %s208
        %s210 = sand.u32 %s49, 1
        %s211 = smul.addr %s210, 64
        %s212 = scalar_lea.vmem [#allocation4], %s211
        %p213 = pneg %p62
        %p214 = pneg %p59
        %s215 = sand.u32 %s77, 1
        %s216 = scalar_lea.sflag [#allocation8], %s215
        %s217 = sand.u32 %s77, 1
        %s218 = smul.addr %s217, 16
        %s219 = scalar_lea.vmem [#allocation7], %s218
        %p220 = pneg %p90
        %p221 = pneg %p87
        %p222 = pneg %p118
        %p223 = pneg %p115
        %s224 = sand.u32 %s105, 1
        %s225 = scalar_lea.sflag [#allocation6], %s224
        %s226 = sand.u32 %s105, 1
        %s227 = scalar_lea.vmem [#allocation9], %s226
        %s228 = smul.u32 2, %s32
        %s229 = smul.u32 2, %s32
        %v230 = vld [vmem:[%s194] sm:$0xff]
        %v231 = vld [vmem:[%s194 + $0x8] sm:$0xff]
        %v232 = vld [vmem:[%s194 + $0x10] sm:$0xff]
        %v233 = vld [vmem:[%s194 + $0x18] sm:$0xff]
        %v234 = vld [vmem:[%s194 + $0x20] sm:$0xff]
        %v235 = vld [vmem:[%s194 + $0x28] sm:$0xff]
        %v236 = vld [vmem:[%s194 + $0x30] sm:$0xff]
        %v237 = vld [vmem:[%s194 + $0x38] sm:$0xff]
        %v238 = vld [vmem:[%s203] sm:$0xff]
        %v239 = vld [vmem:[%s203 + $0x8] sm:$0xff]
        %v240 = vmax.f32 %v230, %v232
        %v241 = vmax.f32 %v231, %v233
        %v242 = vmax.f32 %v240, %v234
        %v243 = vmax.f32 %v241, %v235
        %v244 = vmax.f32 %v242, %v236
        %v245 = vmax.f32 %v243, %v237
        %v246 = vsub.f32 %v230, %v244
        %v247 = vsub.f32 %v231, %v245
        %v248 = vmul.f32 %v246, 1.442695
        %v249 = vpow.pop %v248
        %v250 = vmul.f32 %v247, 1.442695
        %v251 = vpow.pop %v250
        %v252 = vsub.f32 %v232, %v244
        %v253 = vsub.f32 %v233, %v245
        %v254 = vmul.f32 %v252, 1.442695
        %v255 = vpow.pop %v254
        %v256 = vmul.f32 %v253, 1.442695
        %v257 = vpow.pop %v256
        %v258 = vadd.f32 %v249, %v255
        %v259 = vadd.f32 %v251, %v257
        %v260 = vsub.f32 %v234, %v244
        %v261 = vsub.f32 %v235, %v245
        %v262 = vmul.f32 %v260, 1.442695
        %v263 = vpow.pop %v262
        %v264 = vmul.f32 %v261, 1.442695
        %v265 = vpow.pop %v264
        %v266 = vadd.f32 %v258, %v263
        %v267 = vadd.f32 %v259, %v265
        %v268 = vsub.f32 %v236, %v244
        %v269 = vsub.f32 %v237, %v245
        %v270 = vmul.f32 %v268, 1.442695
        %v271 = vpow.pop %v270
        %v272 = vmul.f32 %v269, 1.442695
        %v273 = vpow.pop %v272
        %v274 = vadd.f32 %v266, %v271
        %v275 = vadd.f32 %v267, %v273
        %v276 = vlog2.pop %v274
        %v277 = vmul.f32 %v276, 0.6931472
        %v278 = vlog2.pop %v275
        %v279 = vmul.f32 %v278, 0.6931472
        %v280 = vadd.f32 %v277, %v244
        %v281 = vadd.f32 %v279, %v245
        %vm282 = vcmp.eq.s32.totalorder %v238, 0
        %vm283 = vcmp.eq.s32.totalorder %v239, 0
        %v284 = vsel %vm282, %v230, 0.0
        %v285 = vsel %vm283, %v231, 0.0
        %s286 = sld [smem:[#allocation3]]
        %v287 = vstv %s286
        %v288 = vsel %vm282, %v287, 0.0
        %v289 = vsel %vm283, %v287, 0.0
        %vm290 = vcmp.eq.s32.totalorder %v238, 1
        %vm291 = vcmp.eq.s32.totalorder %v239, 1
        %v292 = vsel %vm290, %v232, %v284
        %v293 = vsel %vm291, %v233, %v285
        %s294 = sld [smem:[#allocation3 + $0x1]]
        %v295 = vstv %s294
        %v296 = vsel %vm290, %v295, %v288
        %v297 = vsel %vm291, %v295, %v289
        %vm298 = vcmp.eq.s32.totalorder %v238, 2
        %vm299 = vcmp.eq.s32.totalorder %v239, 2
        %v300 = vsel %vm298, %v234, %v292
        %v301 = vsel %vm299, %v235, %v293
        %s302 = sld [smem:[#allocation3 + $0x2]]
        %v303 = vstv %s302
        %v304 = vsel %vm298, %v303, %v296
        %v305 = vsel %vm299, %v303, %v297
        %vm306 = vcmp.eq.s32.totalorder %v238, 3
        %vm307 = vcmp.eq.s32.totalorder %v239, 3
        %v308 = vsel %vm306, %v236, %v300
        %v309 = vsel %vm307, %v237, %v301
        %s310 = sld [smem:[#allocation3 + $0x3]]
        %v311 = vstv %s310
        %v312 = vsel %vm306, %v311, %v304
        %v313 = vsel %vm307, %v311, %v305
        %v314 = vsub.f32 %v280, %v308
        %v315 = vsub.f32 %v281, %v309
        %s316 = smul.u32 %s32, 16
        %v317 = vlaneseq
        %v318 = vshrl.u32 %v317, 7
        %v319 = vadd.s32 %v318, 8
        %v320 = vstv %s316
        %v321 = vadd.s32 %v320, %v318
        %v322 = vadd.s32 %v320, %v319
        %vm323 = vcmp.lt.s32.totalorder %v321, 16
        %vm324 = vcmp.lt.s32.totalorder %v322, 16
        %v325 = vsel %vm323, %v314, 0.0
        %v326 = vsel %vm324, %v315, 0.0
        %v327 = vsel %vm323, %v312, 0.0
        %v328 = vsel %vm324, %v313, 0.0
        %v329 = vmul.f32 %v327, %v325
        %v330 = vmul.f32 %v328, %v326
        %vm331 = vcmask 130048
        %v332 = vsel %vm331, %v329, 0.0
        %v333 = vsel %vm331, %v330, 0.0
        %v334 = vadd.f32 %v332, %v333
        %335 = vadd.xlane.f32.xlu0 %v334
        %v336 = vpop.xlane.xlu0 %335
        %v337 = vrot.slane %v336, 4
        %v338 = vadd.f32 %v336, %v337
        %v339 = vrot.slane %v338, 2
        %v340 = vadd.f32 %v338, %v339
        %v341 = vrot.slane %v340, 1
        %v342 = vadd.f32 %v340, %v341
        %s343 = vtos %v342
        %v344 = vsel %vm331, %v327, 0.0
        %v345 = vsel %vm331, %v328, 0.0
        %v346 = vadd.f32 %v344, %v345
        %347 = vadd.xlane.f32.xlu0 %v346
        %v348 = vpop.xlane.xlu0 %347
        %v349 = vrot.slane %v348, 4
        %v350 = vadd.f32 %v348, %v349
        %v351 = vrot.slane %v350, 2
        %v352 = vadd.f32 %v350, %v351
        %v353 = vrot.slane %v352, 1
        %v354 = vadd.f32 %v352, %v353
        %s355 = vtos %v354
        %v356 = vlaneseq
        %v357 = vand.u32 %v356, 127
        %vm358 = vcmp.eq.s32.totalorder %v357, 0
        %vm359 = vcmp.eq.s32.totalorder %v357, 1
        %v360 = vstv %s355
        %v361 = vsel %vm359, %v360, 0.0
        %v362 = vstv %s343
        %v363 = vsel %vm358, %v362, %v361
        %364 = vst [vmem:[%s227] sm:$0x1] %v363
        %s365 = sand.u32 %s105, 1
        %s366 = scalar_lea.sflag [#allocation6], %s365
        %s367 = sand.u32 %s105, 1
        %s368 = scalar_lea.vmem [#allocation9], %s367
        // Predicated region
        $region37: #{tpu_custom_call.1} parent=27 // pred_check
          %p369 = pneg %p115
        $region38: #{tpu_custom_call.1} parent=27 // pred_check_branch
          %371 = sbr.rel (%p369) target = $region40
        $region39: #{tpu_custom_call.1} parent=27 // pred_region
          %s373 = ssub.s32 16, 16
          %374 = vsyncadd %s366, %s373
          %s375 = sadd.s32 %s32, %s31
          %s376 = smul.addr %s375, 16
          %s377 = scalar_lea.hbm %s3, %s376
          %s379 = sshll.u32 %s368, 4
          %s380 = int_to_ptr.vmem [resolvable:$true] %s379
          %382 = dma.vmem_to_hbm [thread:$0]  %s380, 16, %s377, %s366
        $region40: #{tpu_custom_call.1} parent=27 // pred_fallthru
          _
      $region28: #{tpu_custom_call.1} parent=5 // pred_fallthru
        _
      %p383 = scmp.le.s32.totalorder 2, %s22
      // Predicated region
      $region41: #{tpu_custom_call.1} parent=5 // pred_check
        %p384 = pneg %p383
      $region42: #{tpu_custom_call.1} parent=5 // pred_check_branch
        %386 = sbr.rel (%p384) target = $region44
      $region43: #{tpu_custom_call.1} parent=5 // pred_region
        %s387 = ssub.s32 %s22, 2
        // Predicated region
        $region45: #{tpu_custom_call.1} parent=43 // pred_check
          %p388 = pneg %p121
        $region46: #{tpu_custom_call.1} parent=43 // pred_check_branch
          %390 = sbr.rel (%p388) target = $region48
        $region47: #{tpu_custom_call.1} parent=43 // pred_region
          %s391 = sand.u32 %s106, 1
          %s392 = scalar_lea.sflag [#allocation6], %s391
          %s393 = sand.u32 %s106, 1
          %s394 = scalar_lea.vmem [#allocation9], %s393
          %395 = dma.done %s392, 16
        $region48: #{tpu_custom_call.1} parent=43 // pred_fallthru
          _
      $region44: #{tpu_custom_call.1} parent=5 // pred_fallthru
        _
    $region6: #{tpu_custom_call.1} parent=1 // loop_footer
      %s26 = sadd.s32 1, %s22
    $region7: #{tpu_custom_call.1} parent=1 // loop_footer_branch
      %21 = sbr.rel target = $region3
    $region8: #{tpu_custom_call.1} parent=1 // loop_exit
      _
    %396 = vsyncpa [#allocation5], 1
    %s397 = scalar_lea.sflag [#allocation5], 1
    %398 = vsyncpa %s397, 1
    %399 = vsyncpa [#allocation8], 1
    %s400 = scalar_lea.sflag [#allocation8], 1
    %401 = vsyncpa %s400, 1
    %402 = vsyncpa [#allocation6], 1
    %s403 = scalar_lea.sflag [#allocation6], 1
    %404 = vsyncpa %s403, 1

</llo_original>
